<compile_context>
chip_gen: v6e
topology: v6e:2x2x1
jax: 0.10.0
libtpu: 0.0.40
codegen_flags: <defaults>
</compile_context>

<pallas_src>
import jax
import jax.numpy as jnp
import numpy as np
from jax import lax
from jax.experimental import pallas as pl
from jax.experimental.pallas import tpu as pltpu


def _round_up(x, m):
    return ((x + m - 1) // m) * m


def gmf_kernel(uid_ref, iid_ref, ue_ref, ie_ref, o_ref):
    # uid_ref / iid_ref : (TB, 1) int32 id tiles in VMEM
    # ue_ref (U, D), ie_ref (I, D) : VMEM-resident tables (biases pre-folded)
    # o_ref  (TB, D)               : output tile for this grid step
    tb = o_ref.shape[0]
    user_count = ue_ref.shape[0]
    item_count = ie_ref.shape[0]

    uid = uid_ref[...]                                     # (TB, 1) int32
    iid = iid_ref[...]                                     # (TB, 1) int32

    # One-hot gather on the MXU: (TB, N) @ (N, D) -> (TB, D).  Exact (rows of 0/1).
    onehot_u = (lax.broadcasted_iota(jnp.int32, (tb, user_count), 1) == uid
                ).astype(ue_ref.dtype)
    onehot_i = (lax.broadcasted_iota(jnp.int32, (tb, item_count), 1) == iid
                ).astype(ie_ref.dtype)
    u = jnp.dot(onehot_u, ue_ref[...], preferred_element_type=jnp.float32)
    v = jnp.dot(onehot_i, ie_ref[...], preferred_element_type=jnp.float32)

    # Single full-tile elementwise product -> one unmasked lane-dense block store.
    o_ref[...] = (u * v).astype(o_ref.dtype)


def gmf_forward(user_ids, item_ids, user_emb, user_bias, item_emb, item_bias,
                *, block_batch=None):
    """user_ids/item_ids: (B,) ints; tables as documented above. Returns (B, D) f32."""
    batch = user_ids.shape[0]
    user_count, emb_dim = user_emb.shape
    item_count = item_emb.shape[0]
    assert emb_dim % 128 == 0, "embedding_dim must be a multiple of 128 (TPU lane constraint)"

    # Fold the (N, 1) biases into the tables once in the wrapper (exact, and removes
    # the 128x lane-padded bias arrays from VMEM entirely).
    user_table = (user_emb + user_bias).astype(jnp.float32)
    item_table = (item_emb + item_bias).astype(jnp.float32)

    # Batch tile: multiple of 8, up to 512 rows per grid step.
    if block_batch is None:
        block_batch = max(8, min(512, _round_up(batch, 8)))
    block_batch = _round_up(block_batch, 8)

    padded = pl.cdiv(batch, block_batch) * block_batch
    if padded != batch:
        pad = padded - batch
        user_ids = jnp.pad(user_ids, (0, pad))   # pad with id 0 (valid row, sliced off)
        item_ids = jnp.pad(item_ids, (0, pad))
    uid2d = user_ids.astype(jnp.int32).reshape(padded, 1)
    iid2d = item_ids.astype(jnp.int32).reshape(padded, 1)

    # Padding/buffering-aware VMEM accounting for the resident-table fast path:
    #   tables: single buffer each (untiled VMEM operand), sublane-padded row count
    #   ids   : 2 inputs x 2 pipeline buffers, (TB,1) int32 lane-padded to (TB,128)
    #   output: 2 pipeline buffers of (TB, D) f32
    #   onehot: (TB, U) + (TB, I) f32 intermediates (lane-padded)
    table_vmem = 4 * emb_dim * (_round_up(user_count, 8) + _round_up(item_count, 8))
    id_vmem = 2 * 2 * (block_batch * 128 * 4)
    out_vmem = 2 * (block_batch * emb_dim * 4)
    onehot_vmem = 4 * block_batch * (_round_up(user_count, 128) + _round_up(item_count, 128))
    needed = table_vmem + id_vmem + out_vmem + onehot_vmem

    try:
        info = pltpu.get_tpu_info()
        vmem_cap = int(getattr(info, "vmem_capacity_bytes", 64 * 1024 * 1024))
    except Exception:  # pragma: no cover - conservative fallback (v7x per-TC size)
        vmem_cap = 64 * 1024 * 1024
    budget = vmem_cap - (8 << 20)  # leave headroom for compiler-internal scratch
    # TODO(synk): HBM-gather path (pl.ANY table refs + double-buffered make_async_copy
    #             row DMAs into VMEM scratch) for tables exceeding the per-TC budget.
    assert needed <= budget, (
        f"tables too large for the VMEM-resident path ({needed} B > {budget} B)")
    vmem_limit = int(min(vmem_cap, max(needed + (4 << 20), 32 << 20)))

    out = pl.pallas_call(
        gmf_kernel,
        grid=(padded // block_batch,),
        in_specs=[
            pl.BlockSpec((block_batch, 1), lambda t: (t, 0)),          # user ids tile
            pl.BlockSpec((block_batch, 1), lambda t: (t, 0)),          # item ids tile
            pl.BlockSpec(memory_space=pltpu.MemorySpace.VMEM),         # user table (resident)
            pl.BlockSpec(memory_space=pltpu.MemorySpace.VMEM),         # item table (resident)
        ],
        out_specs=pl.BlockSpec((block_batch, emb_dim), lambda t: (t, 0)),
        out_shape=jax.ShapeDtypeStruct((padded, emb_dim), jnp.float32),
        compiler_params=pltpu.CompilerParams(
            # independent batch tiles -> shard across both TensorCores on v7x
            dimension_semantics=("parallel",),
            vmem_limit_bytes=vmem_limit,
        ),
    )(uid2d, iid2d, user_table, item_table)

    return out[:batch]


def init_gmf_params(key, user_count, item_count, embedding_dim):
    """Deterministic xavier-normal embeddings, zero biases (matches __init__)."""
    k_u, k_i = jax.random.split(key)
    # xavier_normal_ for an (num, dim) weight: std = sqrt(2 / (num + dim))
    u_std = np.sqrt(2.0 / (user_count + embedding_dim))
    i_std = np.sqrt(2.0 / (item_count + embedding_dim))
    user_emb = u_std * jax.random.normal(k_u, (user_count, embedding_dim), jnp.float32)
    item_emb = i_std * jax.random.normal(k_i, (item_count, embedding_dim), jnp.float32)
    user_bias = jnp.zeros((user_count, 1), jnp.float32)
    item_bias = jnp.zeros((item_count, 1), jnp.float32)
    return user_emb, user_bias, item_emb, item_bias


if __name__ == "__main__":
    USER_COUNT = 64
    ITEM_COUNT = 96
    EMB_DIM = 128
    BATCH = 8

    key = jax.random.PRNGKey(0)
    k_params, k_u_ids, k_i_ids = jax.random.split(key, 3)

    user_emb, user_bias, item_emb, item_bias = init_gmf_params(
        k_params, USER_COUNT, ITEM_COUNT, EMB_DIM
    )

    user_ids = jax.random.randint(k_u_ids, (BATCH,), 0, USER_COUNT, dtype=jnp.int32)
    item_ids = jax.random.randint(k_i_ids, (BATCH,), 0, ITEM_COUNT, dtype=jnp.int32)

    out = gmf_forward(user_ids, item_ids, user_emb, user_bias, item_emb, item_bias)
    out = jax.block_until_ready(out)

    # Pure-JAX reference for correctness.
    ref_user = user_emb[user_ids] + user_bias[user_ids]   # (B, D) + (B, 1)
    ref_item = item_emb[item_ids] + item_bias[item_ids]
    ref = ref_user * ref_item

    if not np.allclose(np.asarray(out), np.asarray(ref), rtol=1e-5, atol=1e-6):
        raise AssertionError("Pallas GMF output mismatch vs reference")

    print("KERNEL_OK")
</pallas_src>

<mosaic_0001>
module attributes {stable_mosaic.version = 11 : i64} {
  func.func @gmf_kernel(%arg0: i32, %arg1: memref<8x1xi32, #tpu.memory_space<vmem>>, %arg2: memref<8x1xi32, #tpu.memory_space<vmem>>, %arg3: memref<64x128xf32, #tpu.memory_space<vmem>>, %arg4: memref<96x128xf32, #tpu.memory_space<vmem>>, %arg5: memref<8x128xf32, #tpu.memory_space<vmem>>) attributes {dimension_semantics = [#tpu.dimension_semantics<parallel>], iteration_bounds = array<i64: 1>, scalar_prefetch = 0 : i64, scratch_operands = 0 : i64, tpu.core_type = #tpu.core_type<tc>, window_params = [{transform_indices = @transform_0, window_bounds = array<i64: 8, 1>}, {transform_indices = @transform_1, window_bounds = array<i64: 8, 1>}, {pipeline_mode = #tpu.pipeline_mode<synchronous>, transform_indices = @transform_2, window_bounds = array<i64: 64, 128>}, {pipeline_mode = #tpu.pipeline_mode<synchronous>, transform_indices = @transform_3, window_bounds = array<i64: 96, 128>}, {transform_indices = @transform_4, window_bounds = array<i64: 8, 128>}]} {
    %c0 = arith.constant 0 : index
    %c0_0 = arith.constant 0 : index
    %0 = vector.load %arg1[%c0, %c0_0] : memref<8x1xi32, #tpu.memory_space<vmem>>, vector<8x1xi32>
    %c0_1 = arith.constant 0 : index
    %c0_2 = arith.constant 0 : index
    %1 = vector.load %arg2[%c0_1, %c0_2] : memref<8x1xi32, #tpu.memory_space<vmem>>, vector<8x1xi32>
    %2 = tpu.iota {dimensions = array<i32: 1>} : vector<8x64xi32>
    %3 = vector.broadcast %0 : vector<8x1xi32> to vector<8x64xi32>
    %4 = arith.cmpi eq, %2, %3 : vector<8x64xi32>
    %5 = arith.extui %4 : vector<8x64xi1> to vector<8x64xi32>
    %6 = arith.sitofp %5 : vector<8x64xi32> to vector<8x64xf32>
    %7 = tpu.iota {dimensions = array<i32: 1>} : vector<8x96xi32>
    %8 = vector.broadcast %1 : vector<8x1xi32> to vector<8x96xi32>
    %9 = arith.cmpi eq, %7, %8 : vector<8x96xi32>
    %10 = arith.extui %9 : vector<8x96xi1> to vector<8x96xi32>
    %11 = arith.sitofp %10 : vector<8x96xi32> to vector<8x96xf32>
    %c0_3 = arith.constant 0 : index
    %c0_4 = arith.constant 0 : index
    %12 = vector.load %arg3[%c0_3, %c0_4] : memref<64x128xf32, #tpu.memory_space<vmem>>, vector<64x128xf32>
    %cst = arith.constant dense<0.000000e+00> : vector<8x128xf32>
    %13 = tpu.matmul %6, %12, %cst {dimension_numbers = #tpu.dot_dimension_numbers<[1], [0], [0], [1], [0, 0, 1, 1], [], []>} : vector<8x64xf32>, vector<64x128xf32>, vector<8x128xf32> -> vector<8x128xf32>
    %c0_5 = arith.constant 0 : index
    %c0_6 = arith.constant 0 : index
    %14 = vector.load %arg4[%c0_5, %c0_6] : memref<96x128xf32, #tpu.memory_space<vmem>>, vector<96x128xf32>
    %cst_7 = arith.constant dense<0.000000e+00> : vector<8x128xf32>
    %15 = tpu.matmul %11, %14, %cst_7 {dimension_numbers = #tpu.dot_dimension_numbers<[1], [0], [0], [1], [0, 0, 1, 1], [], []>} : vector<8x96xf32>, vector<96x128xf32>, vector<8x128xf32> -> vector<8x128xf32>
    %16 = arith.mulf %13, %15 : vector<8x128xf32>
    %c0_8 = arith.constant 0 : index
    %c0_9 = arith.constant 0 : index
    %17 = vector.load %arg5[%c0_8, %c0_9] : memref<8x128xf32, #tpu.memory_space<vmem>>, vector<8x128xf32>
    tpu.vector_store %arg5[%c0_8, %c0_9], %16 {strides = array<i32>} : memref<8x128xf32, #tpu.memory_space<vmem>>, vector<8x128xf32>,
    return
  }
  func.func @transform_0(%arg0: i32) -> (i32, i32) {
    %c0_i32 = arith.constant 0 : i32
    %c0_i32_0 = arith.constant 0 : i32
    return %arg0, %c0_i32 : i32, i32
  }
  func.func @transform_1(%arg0: i32) -> (i32, i32) {
    %c0_i32 = arith.constant 0 : i32
    %c0_i32_0 = arith.constant 0 : i32
    return %arg0, %c0_i32 : i32, i32
  }
  func.func @transform_2(%arg0: i32) -> (i32, i32) {
    %c0_i32 = arith.constant 0 : i32
    %c0_i32_0 = arith.constant 0 : i32
    %c0_i32_1 = arith.constant 0 : i32
    return %c0_i32, %c0_i32_0 : i32, i32
  }
  func.func @transform_3(%arg0: i32) -> (i32, i32) {
    %c0_i32 = arith.constant 0 : i32
    %c0_i32_0 = arith.constant 0 : i32
    %c0_i32_1 = arith.constant 0 : i32
    return %c0_i32, %c0_i32_0 : i32, i32
  }
  func.func @transform_4(%arg0: i32) -> (i32, i32) {
    %c0_i32 = arith.constant 0 : i32
    %c0_i32_0 = arith.constant 0 : i32
    return %arg0, %c0_i32 : i32, i32
  }
}

</mosaic_0001>

<llo_original>
// kernel: tpu_custom_call.1
$region0: #{tpu_custom_call.1}
  #allocation0 [shape = 'u32[]', space=smem, size = 0x4, offset = 0x4, fixed_abs, tag = 'smem constant byte address 0x4 - core index']
  #allocation1 [shape = 'u32[144,128]{1,0:T(1,128)}', space=vmem, size = 0x12000, scoped, tag = 'internal scratch']
  %s0 = inlined_call_operand.vmem [shape: s32[8,1], index: 0, kind: input, shape index: {}]
  %s1 = inlined_call_operand.vmem [shape: s32[8,1], index: 1, kind: input, shape index: {}]
  %s2 = inlined_call_operand.hbm [shape: f32[64,128], index: 2, kind: input, shape index: {}]
  %s3 = inlined_call_operand.hbm [shape: f32[96,128], index: 3, kind: input, shape index: {}]
  %s4 = inlined_call_operand.hbm [shape: f32[8,128], index: 4, kind: output, shape index: {}]
  %s5 = sld [smem:[#allocation0]]
  $region34: #{tpu_custom_call.1} parent=0
    _
  %s7 = ssub.s32 1, %s5
  %s8 = scalar_select 0, %s7, %s5
  $region1: #{tpu_custom_call.1} parent=0
    #allocation2 [shape = 'u8[32768]{0}', space=vmem, size = 0x8000, scoped, tag = 'input window, operand 2, single buffered']
    #allocation3 [shape = 's32[1]{0}', space=sflag, size = 0x4, scoped, tag = 'scoped memory for tpu_custom_call.1']
    #allocation4 [shape = 's32[1]{0}', space=sflag, size = 0x4, scoped, tag = 'scoped memory for tpu_custom_call.1']
    #allocation5 [shape = 'u8[49152]{0}', space=vmem, size = 0xc000, scoped, tag = 'input window, operand 3, single buffered']
    #allocation6 [shape = 's32[1]{0}', space=sflag, size = 0x4, scoped, tag = 'scoped memory for tpu_custom_call.1']
    #allocation7 [shape = 'u8[4096]{0}', space=vmem, size = 0x1000, scoped, tag = 'output window, operand 0, single buffered']
    %9 = vsyncpa [#allocation3], 0
    %10 = vsyncpa [#allocation6], 0
    %11 = vsyncpa [#allocation4], 0
    // Predicated region
    $region2: #{tpu_custom_call.1} parent=1 // pred_check
      _
    $region3: #{tpu_custom_call.1} parent=1 // pred_check_branch
      %13 = sbr.rel (0) target = $region5
    $region4: #{tpu_custom_call.1} parent=1 // pred_region
      _
    $region5: #{tpu_custom_call.1} parent=1 // pred_fallthru
      _
    // Predicated region
    $region6: #{tpu_custom_call.1} parent=1 // pred_check
      _
    $region7: #{tpu_custom_call.1} parent=1 // pred_check_branch
      %15 = sbr.rel (0) target = $region9
    $region8: #{tpu_custom_call.1} parent=1 // pred_region
      _
    $region9: #{tpu_custom_call.1} parent=1 // pred_fallthru
      _
    // Predicated region
    $region10: #{tpu_custom_call.1} parent=1 // pred_check
      _
    $region11: #{tpu_custom_call.1} parent=1 // pred_check_branch
      %17 = sbr.rel (0) target = $region13
    $region12: #{tpu_custom_call.1} parent=1 // pred_region
      %s19 = ssub.s32 1024, 1024
      %20 = vsyncadd [#allocation3], %s19
      %s21 = sshll.u32 [#allocation2], 4
      %s22 = int_to_ptr.vmem [resolvable:$true] %s21
      %27 = dma.hbm_to_vmem [thread:$0]  %s2, 1024, %s22, [#allocation3], 128, 128, 8
    $region13: #{tpu_custom_call.1} parent=1 // pred_fallthru
      _
    // Predicated region
    $region14: #{tpu_custom_call.1} parent=1 // pred_check
      _
    $region15: #{tpu_custom_call.1} parent=1 // pred_check_branch
      %29 = sbr.rel (0) target = $region17
    $region16: #{tpu_custom_call.1} parent=1 // pred_region
      %s31 = ssub.s32 1536, 1536
      %32 = vsyncadd [#allocation6], %s31
      %s33 = sshll.u32 [#allocation5], 4
      %s34 = int_to_ptr.vmem [resolvable:$true] %s33
      %39 = dma.hbm_to_vmem [thread:$0]  %s3, 1536, %s34, [#allocation6], 128, 128, 8
    $region17: #{tpu_custom_call.1} parent=1 // pred_fallthru
      _
    // Predicated region
    $region18: #{tpu_custom_call.1} parent=1 // pred_check
      _
    $region19: #{tpu_custom_call.1} parent=1 // pred_check_branch
      %41 = sbr.rel (0) target = $region21
    $region20: #{tpu_custom_call.1} parent=1 // pred_region
      %42 = dma.done [#allocation3], 1024
    $region21: #{tpu_custom_call.1} parent=1 // pred_fallthru
      _
    // Predicated region
    $region22: #{tpu_custom_call.1} parent=1 // pred_check
      _
    $region23: #{tpu_custom_call.1} parent=1 // pred_check_branch
      %44 = sbr.rel (0) target = $region25
    $region24: #{tpu_custom_call.1} parent=1 // pred_region
      %45 = dma.done [#allocation6], 1536
    $region25: #{tpu_custom_call.1} parent=1 // pred_fallthru
      _
    %v46 = vld [vmem:[%s0] sm:$0xff]
    %v47 = vld [vmem:[%s1] sm:$0xff]
    %v48 = vlaneseq
    %v49 = vand.u32 %v48, 127
    %50 = vset.pattern.permute.xlu0 0
    %51 = vperm.xlu0 %50, %v46
    %v52 = vpop.permute.xlu0 %51
    %vm53 = vcmp.eq.s32.totalorder %v49, %v52
    %v54 = vsel %vm53, 1, 0
    %v55 = vcvt.s32.f32 %v54
    %56 = vset.pattern.permute.xlu0 0
    %57 = vperm.xlu0 %56, %v47
    %v58 = vpop.permute.xlu0 %57
    %vm59 = vcmp.eq.s32.totalorder %v49, %v58
    %v60 = vsel %vm59, 1, 0
    %v61 = vcvt.s32.f32 %v60
    %v62 = vld [vmem:[#allocation2] sm:$0xff]
    %v63 = vld [vmem:[#allocation2 + $0x8] sm:$0xff]
    %v64 = vld [vmem:[#allocation2 + $0x10] sm:$0xff]
    %v65 = vld [vmem:[#allocation2 + $0x18] sm:$0xff]
    %v66 = vld [vmem:[#allocation2 + $0x20] sm:$0xff]
    %v67 = vld [vmem:[#allocation2 + $0x28] sm:$0xff]
    %v68 = vld [vmem:[#allocation2 + $0x30] sm:$0xff]
    %v69 = vld [vmem:[#allocation2 + $0x38] sm:$0xff]
    %vm70 = vcmask 523264
    %v72 = vsel %vm70, %v55, 0
    %74 = vmatprep.subr.mxu0 0.0
    %75 = vmatpush1.msra.mxu0 0.0
    %76 = vmatprep.subr.mxu0 0.0
    %77 = vmatpush1.msra.mxu0 0.0
    %78 = vmatprep.subr.mxu0 0.0
    %79 = vmatpush1.msra.mxu0 0.0
    %80 = vmatprep.subr.mxu0 0.0
    %81 = vmatpush1.msra.mxu0 0.0
    %82 = vmatprep.subr.mxu0 0.0
    %83 = vmatpush1.msra.mxu0 0.0
    %84 = vmatprep.subr.mxu0 0.0
    %85 = vmatpush1.msra.mxu0 0.0
    %86 = vmatprep.subr.mxu0 0.0
    %87 = vmatpush1.msra.mxu0 0.0
    %88 = vmatprep.subr.mxu0 0.0
    %89 = vmatpush1.msra.mxu0 0.0
    %90 = vmatprep.subr.mxu0 0.0
    %91 = vmatpush1.msra.mxu0 %v69
    %92 = vmatprep.subr.mxu0 0.0
    %93 = vmatpush1.msra.mxu0 %v68
    %94 = vmatprep.subr.mxu0 0.0
    %95 = vmatpush1.msra.mxu0 %v67
    %96 = vmatprep.subr.mxu0 0.0
    %97 = vmatpush1.msra.mxu0 %v66
    %98 = vmatprep.subr.mxu0 0.0
    %99 = vmatpush1.msra.mxu0 %v65
    %100 = vmatprep.subr.mxu0 0.0
    %101 = vmatpush1.msra.mxu0 %v64
    %102 = vmatprep.subr.mxu0 0.0
    %103 = vmatpush1.msra.mxu0 %v63
    %104 = vmatprep.subr.mxu0 0.0
    %105 = vmatpush1.msra.mxu0 %v62
    %106 = vmatprep.subr.mxu0 0.0
    %107 = vmatpush2.msra.mxu0 0.0
    %108 = vmatprep.subr.mxu0 0.0
    %109 = vmatpush2.msra.mxu0 0.0
    %110 = vmatprep.subr.mxu0 0.0
    %111 = vmatpush2.msra.mxu0 0.0
    %112 = vmatprep.subr.mxu0 0.0
    %113 = vmatpush2.msra.mxu0 0.0
    %114 = vmatprep.subr.mxu0 0.0
    %115 = vmatpush2.msra.mxu0 0.0
    %116 = vmatprep.subr.mxu0 0.0
    %117 = vmatpush2.msra.mxu0 0.0
    %118 = vmatprep.subr.mxu0 0.0
    %119 = vmatpush2.msra.mxu0 0.0
    %120 = vmatprep.subr.mxu0 0.0
    %121 = vmatpush2.msra.mxu0 0.0
    %122 = vmatprep.subr.mxu0 0.0
    %123 = vmatpush2.msra.mxu0 0.0
    %124 = vmatprep.subr.mxu0 0.0
    %125 = vmatpush2.msra.mxu0 0.0
    %126 = vmatprep.subr.mxu0 0.0
    %127 = vmatpush2.msra.mxu0 0.0
    %128 = vmatprep.subr.mxu0 0.0
    %129 = vmatpush2.msra.mxu0 0.0
    %130 = vmatprep.subr.mxu0 0.0
    %131 = vmatpush2.msra.mxu0 0.0
    %132 = vmatprep.subr.mxu0 0.0
    %133 = vmatpush2.msra.mxu0 0.0
    %134 = vmatprep.subr.mxu0 0.0
    %135 = vmatpush2.msra.mxu0 0.0
    %136 = vmatprep.subr.mxu0 0.0
    %137 = vmatpush2.msra.mxu0 0.0
    %138 = vmatprep.mubr.f32.mxu0 0.0
    %139 = vmatmul.mubr.f32.gmra.mxu0 %v72
    %v140 = vpop.f32.mrf.mxu0
    %v141 = vadd.f32 0.0, %v140
    %v142 = vpop.f32.mrf.mxu0
    %143 = vdwg.mxu0
    %v144 = vld [vmem:[#allocation5] sm:$0xff]
    %v145 = vld [vmem:[#allocation5 + $0x8] sm:$0xff]
    %v146 = vld [vmem:[#allocation5 + $0x10] sm:$0xff]
    %v147 = vld [vmem:[#allocation5 + $0x18] sm:$0xff]
    %v148 = vld [vmem:[#allocation5 + $0x20] sm:$0xff]
    %v149 = vld [vmem:[#allocation5 + $0x28] sm:$0xff]
    %v150 = vld [vmem:[#allocation5 + $0x30] sm:$0xff]
    %v151 = vld [vmem:[#allocation5 + $0x38] sm:$0xff]
    %v152 = vld [vmem:[#allocation5 + $0x40] sm:$0xff]
    %v153 = vld [vmem:[#allocation5 + $0x48] sm:$0xff]
    %v154 = vld [vmem:[#allocation5 + $0x50] sm:$0xff]
    %v155 = vld [vmem:[#allocation5 + $0x58] sm:$0xff]
    %vm156 = vcmask 785408
    %v158 = vsel %vm156, %v61, 0
    %160 = vmatprep.subr.mxu0 0.0
    %161 = vmatpush1.msra.mxu0 0.0
    %162 = vmatprep.subr.mxu0 0.0
    %163 = vmatpush1.msra.mxu0 0.0
    %164 = vmatprep.subr.mxu0 0.0
    %165 = vmatpush1.msra.mxu0 0.0
    %166 = vmatprep.subr.mxu0 0.0
    %167 = vmatpush1.msra.mxu0 0.0
    %168 = vmatprep.subr.mxu0 0.0
    %169 = vmatpush1.msra.mxu0 %v155
    %170 = vmatprep.subr.mxu0 0.0
    %171 = vmatpush1.msra.mxu0 %v154
    %172 = vmatprep.subr.mxu0 0.0
    %173 = vmatpush1.msra.mxu0 %v153
    %174 = vmatprep.subr.mxu0 0.0
    %175 = vmatpush1.msra.mxu0 %v152
    %176 = vmatprep.subr.mxu0 0.0
    %177 = vmatpush1.msra.mxu0 %v151
    %178 = vmatprep.subr.mxu0 0.0
    %179 = vmatpush1.msra.mxu0 %v150
    %180 = vmatprep.subr.mxu0 0.0
    %181 = vmatpush1.msra.mxu0 %v149
    %182 = vmatprep.subr.mxu0 0.0
    %183 = vmatpush1.msra.mxu0 %v148
    %184 = vmatprep.subr.mxu0 0.0
    %185 = vmatpush1.msra.mxu0 %v147
    %186 = vmatprep.subr.mxu0 0.0
    %187 = vmatpush1.msra.mxu0 %v146
    %188 = vmatprep.subr.mxu0 0.0
    %189 = vmatpush1.msra.mxu0 %v145
    %190 = vmatprep.subr.mxu0 0.0
    %191 = vmatpush1.msra.mxu0 %v144
    %192 = vmatprep.subr.mxu0 0.0
    %193 = vmatpush2.msra.mxu0 0.0
    %194 = vmatprep.subr.mxu0 0.0
    %195 = vmatpush2.msra.mxu0 0.0
    %196 = vmatprep.subr.mxu0 0.0
    %197 = vmatpush2.msra.mxu0 0.0
    %198 = vmatprep.subr.mxu0 0.0
    %199 = vmatpush2.msra.mxu0 0.0
    %200 = vmatprep.subr.mxu0 0.0
    %201 = vmatpush2.msra.mxu0 0.0
    %202 = vmatprep.subr.mxu0 0.0
    %203 = vmatpush2.msra.mxu0 0.0
    %204 = vmatprep.subr.mxu0 0.0
    %205 = vmatpush2.msra.mxu0 0.0
    %206 = vmatprep.subr.mxu0 0.0
    %207 = vmatpush2.msra.mxu0 0.0
    %208 = vmatprep.subr.mxu0 0.0
    %209 = vmatpush2.msra.mxu0 0.0
    %210 = vmatprep.subr.mxu0 0.0
    %211 = vmatpush2.msra.mxu0 0.0
    %212 = vmatprep.subr.mxu0 0.0
    %213 = vmatpush2.msra.mxu0 0.0
    %214 = vmatprep.subr.mxu0 0.0
    %215 = vmatpush2.msra.mxu0 0.0
    %216 = vmatprep.subr.mxu0 0.0
    %217 = vmatpush2.msra.mxu0 0.0
    %218 = vmatprep.subr.mxu0 0.0
    %219 = vmatpush2.msra.mxu0 0.0
    %220 = vmatprep.subr.mxu0 0.0
    %221 = vmatpush2.msra.mxu0 0.0
    %222 = vmatprep.subr.mxu0 0.0
    %223 = vmatpush2.msra.mxu0 0.0
    %224 = vmatprep.mubr.f32.mxu0 0.0
    %225 = vmatmul.mubr.f32.gmra.mxu0 %v158
    %v226 = vpop.f32.mrf.mxu0
    %v227 = vadd.f32 0.0, %v226
    %v228 = vpop.f32.mrf.mxu0
    %229 = vdwg.mxu0
    %v230 = vmul.f32 %v141, %v227
    %231 = vst [vmem:[#allocation7] sm:$0xff] %v230
    // Predicated region
    $region26: #{tpu_custom_call.1} parent=1 // pred_check
      _
    $region27: #{tpu_custom_call.1} parent=1 // pred_check_branch
      %233 = sbr.rel (0) target = $region29
    $region28: #{tpu_custom_call.1} parent=1 // pred_region
      %s235 = ssub.s32 128, 128
      %236 = vsyncadd [#allocation4], %s235
      %s238 = sshll.u32 [#allocation7], 4
      %s239 = int_to_ptr.vmem [resolvable:$true] %s238
      %241 = dma.vmem_to_hbm [thread:$0]  %s239, 128, %s4, [#allocation4]
    $region29: #{tpu_custom_call.1} parent=1 // pred_fallthru
      _
    // Predicated region
    $region30: #{tpu_custom_call.1} parent=1 // pred_check
      _
    $region31: #{tpu_custom_call.1} parent=1 // pred_check_branch
      %243 = sbr.rel (0) target = $region33
    $region32: #{tpu_custom_call.1} parent=1 // pred_region
      %244 = dma.done [#allocation4], 128
    $region33: #{tpu_custom_call.1} parent=1 // pred_fallthru
      _
    %245 = vsyncpa [#allocation3], 1
    %246 = vsyncpa [#allocation6], 1
    %247 = vsyncpa [#allocation4], 1

</llo_original>
